<compile_context>
chip_gen: v6e
topology: v6e:2x2x1
jax: 0.10.0
libtpu: 0.0.40
codegen_flags: <defaults>
</compile_context>

<pallas_src>
import jax
import jax.numpy as jnp
from jax.experimental import pallas as pl
from jax.experimental.pallas import tpu as pltpu

NUM_SPLINES = 10
LANE = 128
MAX_BLOCK_ROWS = 2048  # (2048,128) f32 = 1 MiB per block


def _round_up(n, m):
    return -(-n // m) * m


def _min_sublane(dtype):
    # Minimum second-minor tile multiple by element width.
    itemsize = jnp.dtype(dtype).itemsize
    return {4: 8, 2: 16, 1: 32}.get(itemsize, 8)


def _spline_kernel(knots_ref, a_ref, b_ref, x_ref, o_ref):
    # knots_ref: (NUM_SPLINES,) f32 in SMEM
    # a_ref/b_ref: (NUM_SPLINES-1,) f32 slope/intercept tables in SMEM
    # x_ref / o_ref: (block_rows, LANE) VMEM tiles in the caller's native dtype
    x = x_ref[...].astype(jnp.float32)

    # Hoist all SMEM scalar reads exactly once.
    knots = [knots_ref[j] for j in range(1, NUM_SPLINES - 1)]   # interior knots 1..8
    a = [a_ref[j] for j in range(NUM_SPLINES - 1)]
    b = [b_ref[j] for j in range(NUM_SPLINES - 1)]

    # Select chain: bin index is the largest j with knots[j] < x (clamped to the
    # edge bins outside the domain).  One predicate per interior knot, reused for
    # both the slope and the intercept select -> minimal VALU work, tiny live set.
    acc_a = jnp.full_like(x, a[0])
    acc_b = jnp.full_like(x, b[0])
    for j in range(1, NUM_SPLINES - 1):
        pred = knots[j - 1] < x            # knots[j] < x
        acc_a = jnp.where(pred, a[j], acc_a)
        acc_b = jnp.where(pred, b[j], acc_b)

    o_ref[...] = (acc_a * x + acc_b).astype(o_ref.dtype)


def spline_activation(x, knots, weights, *, max_block_rows=MAX_BLOCK_ROWS):
    orig_shape = x.shape
    orig_dtype = x.dtype

    knots_f = knots.astype(jnp.float32)
    weights_f = weights.astype(jnp.float32)
    # Per-bin affine tables: for knots[j] < x <= knots[j+1],  out = a[j]*x + b[j].
    a = weights_f[:-1] - weights_f[1:]
    b = weights_f[1:] * knots_f[1:] - weights_f[:-1] * knots_f[:-1]

    # Flatten to a lane-major (rows, 128) slab in native dtype (cast happens in-kernel).
    flat = x.reshape(-1)
    total = flat.shape[0]
    sub = _min_sublane(orig_dtype)

    rows = _round_up(pl.cdiv(total, LANE), sub)   # pad only to the dtype sublane multiple
    pad = rows * LANE - total
    if pad:
        flat = jnp.pad(flat, (0, pad))
    x2 = flat.reshape(rows, LANE)

    # Block choice: big enough to amortize per-step overhead, but split into >= 2
    # grid steps when possible so both v7x TensorCores get work.
    block_rows = min(max_block_rows, _round_up(pl.cdiv(rows, 2), sub))
    block_rows = min(block_rows, rows)
    grid = (pl.cdiv(rows, block_rows),)

    out2 = pl.pallas_call(
        _spline_kernel,
        out_shape=jax.ShapeDtypeStruct((rows, LANE), orig_dtype),
        grid=grid,
        in_specs=[
            pl.BlockSpec(memory_space=pltpu.MemorySpace.SMEM),     # knots
            pl.BlockSpec(memory_space=pltpu.MemorySpace.SMEM),     # a (slopes)
            pl.BlockSpec(memory_space=pltpu.MemorySpace.SMEM),     # b (intercepts)
            pl.BlockSpec((block_rows, LANE), lambda i: (i, 0)),    # x tile
        ],
        out_specs=pl.BlockSpec((block_rows, LANE), lambda i: (i, 0)),
        compiler_params=pltpu.CompilerParams(
            dimension_semantics=("parallel",)),
    )(knots_f, a, b, x2)

    if pad:
        return out2.reshape(-1)[:total].reshape(orig_shape)
    return out2.reshape(orig_shape)


def _reference(x, knots, weights):
    # Pure-JAX reference mirroring the PyTorch forward.
    idx = jnp.searchsorted(knots, x, side="left")
    left = weights[idx - 1] * (x - knots[idx - 1])
    right = weights[idx] * (knots[idx] - x)
    return left + right


if __name__ == "__main__":
    key = jax.random.PRNGKey(0)
    k_x, k_w = jax.random.split(key)

    # Deterministic parameters, shapes from SplineActivation.__init__:
    #   weights = randn(num_splines) * 0.5 ; knots = linspace(-1, 1, num_splines)
    weights = jax.random.normal(k_w, (NUM_SPLINES,), dtype=jnp.float32) * 0.5
    knots = jnp.linspace(-1.0, 1.0, NUM_SPLINES, dtype=jnp.float32)

    # Inputs kept strictly inside (knots[0], knots[-1]): outside that range the PyTorch
    # reference's index_select itself indexes out of bounds.
    x = jax.random.uniform(
        k_x, (2, 4, 16, 16), dtype=jnp.float32, minval=-0.95, maxval=0.95
    )

    out = spline_activation(x, knots, weights)
    out = jax.block_until_ready(out)

    ref = _reference(x, knots, weights)
    assert out.shape == x.shape
    assert out.dtype == x.dtype
    assert jnp.allclose(out, ref, atol=1e-5, rtol=1e-5)
    print("KERNEL_OK")
</pallas_src>

<mosaic_0001>
module attributes {stable_mosaic.version = 11 : i64} {
  func.func @_spline_kernel(%arg0: i32, %arg1: memref<10xf32, #tpu.memory_space<smem>>, %arg2: memref<9xf32, #tpu.memory_space<smem>>, %arg3: memref<9xf32, #tpu.memory_space<smem>>, %arg4: memref<8x128xf32, #tpu.memory_space<vmem>>, %arg5: memref<8x128xf32, #tpu.memory_space<vmem>>) attributes {dimension_semantics = [#tpu.dimension_semantics<parallel>], iteration_bounds = array<i64: 2>, scalar_prefetch = 0 : i64, scratch_operands = 0 : i64, tpu.core_type = #tpu.core_type<tc>, window_params = [{transform_indices = @transform_0, window_bounds = array<i64: 10>}, {transform_indices = @transform_1, window_bounds = array<i64: 9>}, {transform_indices = @transform_2, window_bounds = array<i64: 9>}, {transform_indices = @transform_3, window_bounds = array<i64: 8, 128>}, {transform_indices = @transform_4, window_bounds = array<i64: 8, 128>}]} {
    %c0 = arith.constant 0 : index
    %c0_0 = arith.constant 0 : index
    %0 = vector.load %arg4[%c0, %c0_0] : memref<8x128xf32, #tpu.memory_space<vmem>>, vector<8x128xf32>
    %c1 = arith.constant 1 : index
    %1 = memref.load %arg1[%c1] : memref<10xf32, #tpu.memory_space<smem>>
    %c2 = arith.constant 2 : index
    %2 = memref.load %arg1[%c2] : memref<10xf32, #tpu.memory_space<smem>>
    %c3 = arith.constant 3 : index
    %3 = memref.load %arg1[%c3] : memref<10xf32, #tpu.memory_space<smem>>
    %c4 = arith.constant 4 : index
    %4 = memref.load %arg1[%c4] : memref<10xf32, #tpu.memory_space<smem>>
    %c5 = arith.constant 5 : index
    %5 = memref.load %arg1[%c5] : memref<10xf32, #tpu.memory_space<smem>>
    %c6 = arith.constant 6 : index
    %6 = memref.load %arg1[%c6] : memref<10xf32, #tpu.memory_space<smem>>
    %c7 = arith.constant 7 : index
    %7 = memref.load %arg1[%c7] : memref<10xf32, #tpu.memory_space<smem>>
    %c8 = arith.constant 8 : index
    %8 = memref.load %arg1[%c8] : memref<10xf32, #tpu.memory_space<smem>>
    %c0_1 = arith.constant 0 : index
    %9 = memref.load %arg2[%c0_1] : memref<9xf32, #tpu.memory_space<smem>>
    %c1_2 = arith.constant 1 : index
    %10 = memref.load %arg2[%c1_2] : memref<9xf32, #tpu.memory_space<smem>>
    %c2_3 = arith.constant 2 : index
    %11 = memref.load %arg2[%c2_3] : memref<9xf32, #tpu.memory_space<smem>>
    %c3_4 = arith.constant 3 : index
    %12 = memref.load %arg2[%c3_4] : memref<9xf32, #tpu.memory_space<smem>>
    %c4_5 = arith.constant 4 : index
    %13 = memref.load %arg2[%c4_5] : memref<9xf32, #tpu.memory_space<smem>>
    %c5_6 = arith.constant 5 : index
    %14 = memref.load %arg2[%c5_6] : memref<9xf32, #tpu.memory_space<smem>>
    %c6_7 = arith.constant 6 : index
    %15 = memref.load %arg2[%c6_7] : memref<9xf32, #tpu.memory_space<smem>>
    %c7_8 = arith.constant 7 : index
    %16 = memref.load %arg2[%c7_8] : memref<9xf32, #tpu.memory_space<smem>>
    %c8_9 = arith.constant 8 : index
    %17 = memref.load %arg2[%c8_9] : memref<9xf32, #tpu.memory_space<smem>>
    %c0_10 = arith.constant 0 : index
    %18 = memref.load %arg3[%c0_10] : memref<9xf32, #tpu.memory_space<smem>>
    %c1_11 = arith.constant 1 : index
    %19 = memref.load %arg3[%c1_11] : memref<9xf32, #tpu.memory_space<smem>>
    %c2_12 = arith.constant 2 : index
    %20 = memref.load %arg3[%c2_12] : memref<9xf32, #tpu.memory_space<smem>>
    %c3_13 = arith.constant 3 : index
    %21 = memref.load %arg3[%c3_13] : memref<9xf32, #tpu.memory_space<smem>>
    %c4_14 = arith.constant 4 : index
    %22 = memref.load %arg3[%c4_14] : memref<9xf32, #tpu.memory_space<smem>>
    %c5_15 = arith.constant 5 : index
    %23 = memref.load %arg3[%c5_15] : memref<9xf32, #tpu.memory_space<smem>>
    %c6_16 = arith.constant 6 : index
    %24 = memref.load %arg3[%c6_16] : memref<9xf32, #tpu.memory_space<smem>>
    %c7_17 = arith.constant 7 : index
    %25 = memref.load %arg3[%c7_17] : memref<9xf32, #tpu.memory_space<smem>>
    %c8_18 = arith.constant 8 : index
    %26 = memref.load %arg3[%c8_18] : memref<9xf32, #tpu.memory_space<smem>>
    %27 = vector.broadcast %9 : f32 to vector<8x128xf32>
    %28 = vector.broadcast %18 : f32 to vector<8x128xf32>
    %29 = vector.broadcast %1 : f32 to vector<8x128xf32>
    %30 = arith.cmpf olt, %29, %0 : vector<8x128xf32>
    %31 = vector.broadcast %10 : f32 to vector<8x128xf32>
    %32 = arith.select %30, %31, %27 : vector<8x128xi1>, vector<8x128xf32>
    %33 = vector.broadcast %19 : f32 to vector<8x128xf32>
    %34 = arith.select %30, %33, %28 : vector<8x128xi1>, vector<8x128xf32>
    %35 = vector.broadcast %2 : f32 to vector<8x128xf32>
    %36 = arith.cmpf olt, %35, %0 : vector<8x128xf32>
    %37 = vector.broadcast %11 : f32 to vector<8x128xf32>
    %38 = arith.select %36, %37, %32 : vector<8x128xi1>, vector<8x128xf32>
    %39 = vector.broadcast %20 : f32 to vector<8x128xf32>
    %40 = arith.select %36, %39, %34 : vector<8x128xi1>, vector<8x128xf32>
    %41 = vector.broadcast %3 : f32 to vector<8x128xf32>
    %42 = arith.cmpf olt, %41, %0 : vector<8x128xf32>
    %43 = vector.broadcast %12 : f32 to vector<8x128xf32>
    %44 = arith.select %42, %43, %38 : vector<8x128xi1>, vector<8x128xf32>
    %45 = vector.broadcast %21 : f32 to vector<8x128xf32>
    %46 = arith.select %42, %45, %40 : vector<8x128xi1>, vector<8x128xf32>
    %47 = vector.broadcast %4 : f32 to vector<8x128xf32>
    %48 = arith.cmpf olt, %47, %0 : vector<8x128xf32>
    %49 = vector.broadcast %13 : f32 to vector<8x128xf32>
    %50 = arith.select %48, %49, %44 : vector<8x128xi1>, vector<8x128xf32>
    %51 = vector.broadcast %22 : f32 to vector<8x128xf32>
    %52 = arith.select %48, %51, %46 : vector<8x128xi1>, vector<8x128xf32>
    %53 = vector.broadcast %5 : f32 to vector<8x128xf32>
    %54 = arith.cmpf olt, %53, %0 : vector<8x128xf32>
    %55 = vector.broadcast %14 : f32 to vector<8x128xf32>
    %56 = arith.select %54, %55, %50 : vector<8x128xi1>, vector<8x128xf32>
    %57 = vector.broadcast %23 : f32 to vector<8x128xf32>
    %58 = arith.select %54, %57, %52 : vector<8x128xi1>, vector<8x128xf32>
    %59 = vector.broadcast %6 : f32 to vector<8x128xf32>
    %60 = arith.cmpf olt, %59, %0 : vector<8x128xf32>
    %61 = vector.broadcast %15 : f32 to vector<8x128xf32>
    %62 = arith.select %60, %61, %56 : vector<8x128xi1>, vector<8x128xf32>
    %63 = vector.broadcast %24 : f32 to vector<8x128xf32>
    %64 = arith.select %60, %63, %58 : vector<8x128xi1>, vector<8x128xf32>
    %65 = vector.broadcast %7 : f32 to vector<8x128xf32>
    %66 = arith.cmpf olt, %65, %0 : vector<8x128xf32>
    %67 = vector.broadcast %16 : f32 to vector<8x128xf32>
    %68 = arith.select %66, %67, %62 : vector<8x128xi1>, vector<8x128xf32>
    %69 = vector.broadcast %25 : f32 to vector<8x128xf32>
    %70 = arith.select %66, %69, %64 : vector<8x128xi1>, vector<8x128xf32>
    %71 = vector.broadcast %8 : f32 to vector<8x128xf32>
    %72 = arith.cmpf olt, %71, %0 : vector<8x128xf32>
    %73 = vector.broadcast %17 : f32 to vector<8x128xf32>
    %74 = arith.select %72, %73, %68 : vector<8x128xi1>, vector<8x128xf32>
    %75 = vector.broadcast %26 : f32 to vector<8x128xf32>
    %76 = arith.select %72, %75, %70 : vector<8x128xi1>, vector<8x128xf32>
    %77 = arith.mulf %74, %0 : vector<8x128xf32>
    %78 = arith.addf %77, %76 : vector<8x128xf32>
    %c0_19 = arith.constant 0 : index
    %c0_20 = arith.constant 0 : index
    %79 = vector.load %arg5[%c0_19, %c0_20] : memref<8x128xf32, #tpu.memory_space<vmem>>, vector<8x128xf32>
    tpu.vector_store %arg5[%c0_19, %c0_20], %78 {strides = array<i32>} : memref<8x128xf32, #tpu.memory_space<vmem>>, vector<8x128xf32>,
    return
  }
  func.func @transform_0(%arg0: i32) -> i32 {
    %c0_i32 = arith.constant 0 : i32
    %c0_i32_0 = arith.constant 0 : i32
    return %c0_i32 : i32
  }
  func.func @transform_1(%arg0: i32) -> i32 {
    %c0_i32 = arith.constant 0 : i32
    %c0_i32_0 = arith.constant 0 : i32
    return %c0_i32 : i32
  }
  func.func @transform_2(%arg0: i32) -> i32 {
    %c0_i32 = arith.constant 0 : i32
    %c0_i32_0 = arith.constant 0 : i32
    return %c0_i32 : i32
  }
  func.func @transform_3(%arg0: i32) -> (i32, i32) {
    %c0_i32 = arith.constant 0 : i32
    %c0_i32_0 = arith.constant 0 : i32
    return %arg0, %c0_i32 : i32, i32
  }
  func.func @transform_4(%arg0: i32) -> (i32, i32) {
    %c0_i32 = arith.constant 0 : i32
    %c0_i32_0 = arith.constant 0 : i32
    return %arg0, %c0_i32 : i32, i32
  }
}

</mosaic_0001>

<llo_original>
// kernel: tpu_custom_call.1
$region0: #{tpu_custom_call.1}
  #allocation0 [shape = 'u32[]', space=smem, size = 0x4, offset = 0x4, fixed_abs, tag = 'smem constant byte address 0x4 - core index']
  #allocation1 [shape = 'u32[144,128]{1,0:T(1,128)}', space=vmem, size = 0x12000, scoped, tag = 'internal scratch']
  %s0 = inlined_call_operand.hbm [shape: f32[10], index: 0, kind: input, shape index: {}]
  %s1 = inlined_call_operand.vmem [shape: f32[9], index: 1, kind: input, shape index: {}]
  %s2 = inlined_call_operand.vmem [shape: f32[9], index: 2, kind: input, shape index: {}]
  %s3 = inlined_call_operand.hbm [shape: f32[16,128], index: 3, kind: input, shape index: {}]
  %s4 = inlined_call_operand.hbm [shape: f32[16,128], index: 4, kind: output, shape index: {}]
  %s5 = sld [smem:[#allocation0]]
  $region65: #{tpu_custom_call.1} parent=0
    _
  %s7 = ssub.s32 1, %s5
  %s8 = scalar_select 0, %s7, %s5
  $region1: #{tpu_custom_call.1} parent=0
    #allocation2 [shape = 'u8[512]{0}', space=smem, size = 0x200, scoped, tag = 'input window, operand 0, single buffered']
    #allocation3 [shape = 's32[2]{0}', space=sflag, size = 0x8, scoped, tag = 'scoped memory for tpu_custom_call.1']
    #allocation4 [shape = 's32[2]{0}', space=sflag, size = 0x8, scoped, tag = 'scoped memory for tpu_custom_call.1']
    #allocation5 [shape = 's32[2]{0}', space=sflag, size = 0x8, scoped, tag = 'scoped memory for tpu_custom_call.1']
    #allocation6 [shape = 's32[2]{0}', space=sflag, size = 0x8, scoped, tag = 'scoped memory for tpu_custom_call.1']
    #allocation7 [shape = 'u8[512]{0}', space=smem, size = 0x200, scoped, tag = 'input window, operand 1, single buffered']
    #allocation8 [shape = 'u8[512]{0}', space=smem, size = 0x200, scoped, tag = 'input window, operand 2, single buffered']
    #allocation9 [shape = 's32[1]{0}', space=sflag, size = 0x4, scoped, tag = 'scoped memory for tpu_custom_call.1']
    #allocation10 [shape = 'u8[8192]{0}', space=vmem, size = 0x2000, scoped, tag = 'input window, operand 3']
    #allocation11 [shape = 'u8[8192]{0}', space=vmem, size = 0x2000, scoped, tag = 'output window, operand 0']
    %9 = vsyncpa [#allocation5], 0
    %10 = vsyncpa [#allocation6], 0
    %11 = vsyncpa [#allocation9], 0
    %12 = vsyncpa [#allocation3], 0
    %s13 = scalar_lea.sflag [#allocation3], 1
    %14 = vsyncpa %s13, 0
    %15 = vsyncpa [#allocation4], 0
    %s16 = scalar_lea.sflag [#allocation4], 1
    %17 = vsyncpa %s16, 0
    loop: start=0, step=1, limit=4
    $region2: #{tpu_custom_call.1} parent=1 // loop_pre_header
      _
    $region3: #{tpu_custom_call.1} parent=1 // loop_header
      %s19 = sphi 0, %s23
      %p20 = scmp.ge.s32.totalorder %s19, 4
      %s27 = sphi 0, %s27
      %s29 = sphi 0, %s27
      %s30 = sphi 0, %s29
      %s44 = sphi 0, %s30
      %s48 = sphi 0, %s48
      %s50 = sphi 0, %s48
      %s51 = sphi 0, %s50
      %s65 = sphi 0, %s51
      %s69 = sphi 0, %s69
      %s71 = sphi 0, %s69
      %s72 = sphi 0, %s71
      %s86 = sphi 0, %s72
      %s92 = sphi 0, %s94
      %s95 = sphi 0, %s92
      %s96 = sphi 0, %s95
      %s112 = sphi 0, %s96
      %s118 = sphi 0, %s120
      %s121 = sphi 0, %s118
      %s122 = sphi 0, %s121
      %s138 = sphi 0, %s122
    $region4: #{tpu_custom_call.1} parent=1 // loop_header_branch
      %22 = sbr.rel (%p20) target = $region8
    $region5: #{tpu_custom_call.1} parent=1 // loop_body
      %s24 = ssub.s32 %s19, 1
      %s25 = ssub.s32 %s19, 2
      %s26 = sadd.s32 %s19, 1
      %s28 = sadd.s32 %s27, 1
      %p31 = scmp.eq.s32.totalorder %s19, 1
      %p32 = scmp.ne.s32.totalorder %s27, %s29
      %p33 = scmp.eq.s32.totalorder %s19, 0
      %p34 = por %p32, %p33
      %p35 = scmp.ne.s32.totalorder %s27, %s29
      %p36 = scmp.eq.s32.totalorder %s24, 1
      %p37 = por %p35, %p36
      %p38 = scmp.ne.s32.totalorder %s29, %s30
      %p39 = scmp.eq.s32.totalorder %s24, 0
      %p40 = por %p38, %p39
      %p41 = scmp.ne.s32.totalorder %s29, %s30
      %p42 = scmp.eq.s32.totalorder %s25, 1
      %p43 = por %p41, %p42
      %p45 = scmp.ne.s32.totalorder %s30, %s44
      %p46 = scmp.eq.s32.totalorder %s25, 0
      %p47 = por %p45, %p46
      %s49 = sadd.s32 %s48, 1
      %p52 = scmp.eq.s32.totalorder %s19, 1
      %p53 = scmp.ne.s32.totalorder %s48, %s50
      %p54 = scmp.eq.s32.totalorder %s19, 0
      %p55 = por %p53, %p54
      %p56 = scmp.ne.s32.totalorder %s48, %s50
      %p57 = scmp.eq.s32.totalorder %s24, 1
      %p58 = por %p56, %p57
      %p59 = scmp.ne.s32.totalorder %s50, %s51
      %p60 = scmp.eq.s32.totalorder %s24, 0
      %p61 = por %p59, %p60
      %p62 = scmp.ne.s32.totalorder %s50, %s51
      %p63 = scmp.eq.s32.totalorder %s25, 1
      %p64 = por %p62, %p63
      %p66 = scmp.ne.s32.totalorder %s51, %s65
      %p67 = scmp.eq.s32.totalorder %s25, 0
      %p68 = por %p66, %p67
      %s70 = sadd.s32 %s69, 1
      %p73 = scmp.eq.s32.totalorder %s19, 1
      %p74 = scmp.ne.s32.totalorder %s69, %s71
      %p75 = scmp.eq.s32.totalorder %s19, 0
      %p76 = por %p74, %p75
      %p77 = scmp.ne.s32.totalorder %s69, %s71
      %p78 = scmp.eq.s32.totalorder %s24, 1
      %p79 = por %p77, %p78
      %p80 = scmp.ne.s32.totalorder %s71, %s72
      %p81 = scmp.eq.s32.totalorder %s24, 0
      %p82 = por %p80, %p81
      %p83 = scmp.ne.s32.totalorder %s71, %s72
      %p84 = scmp.eq.s32.totalorder %s25, 1
      %p85 = por %p83, %p84
      %p87 = scmp.ne.s32.totalorder %s72, %s86
      %p88 = scmp.eq.s32.totalorder %s25, 0
      %p89 = por %p87, %p88
      %s90 = ssub.s32 %s19, %s26
      %p91 = scmp.eq.s32.totalorder %s90, 0
      %s93 = sadd.s32 %s92, 1
      %s94 = scalar_select %p91, %s92, %s93
      %p97 = pneg %p91
      %p98 = scmp.eq.s32.totalorder %s19, 1
      %p99 = por %p97, %p98
      %p100 = scmp.ne.s32.totalorder %s92, %s95
      %p101 = scmp.eq.s32.totalorder %s19, 0
      %p102 = por %p100, %p101
      %p103 = scmp.ne.s32.totalorder %s92, %s95
      %p104 = scmp.eq.s32.totalorder %s24, 1
      %p105 = por %p103, %p104
      %p106 = scmp.ne.s32.totalorder %s95, %s96
      %p107 = scmp.eq.s32.totalorder %s24, 0
      %p108 = por %p106, %p107
      %p109 = scmp.ne.s32.totalorder %s95, %s96
      %p110 = scmp.eq.s32.totalorder %s25, 1
      %p111 = por %p109, %p110
      %p113 = scmp.ne.s32.totalorder %s96, %s112
      %p114 = scmp.eq.s32.totalorder %s25, 0
      %p115 = por %p113, %p114
      %s116 = ssub.s32 %s19, %s26
      %p117 = scmp.eq.s32.totalorder %s116, 0
      %s119 = sadd.s32 %s118, 1
      %s120 = scalar_select %p117, %s118, %s119
      %p123 = pneg %p117
      %p124 = scmp.eq.s32.totalorder %s19, 1
      %p125 = por %p123, %p124
      %p126 = scmp.ne.s32.totalorder %s118, %s121
      %p127 = scmp.eq.s32.totalorder %s19, 0
      %p128 = por %p126, %p127
      %p129 = scmp.ne.s32.totalorder %s118, %s121
      %p130 = scmp.eq.s32.totalorder %s24, 1
      %p131 = por %p129, %p130
      %p132 = scmp.ne.s32.totalorder %s121, %s122
      %p133 = scmp.eq.s32.totalorder %s24, 0
      %p134 = por %p132, %p133
      %p135 = scmp.ne.s32.totalorder %s121, %s122
      %p136 = scmp.eq.s32.totalorder %s25, 1
      %p137 = por %p135, %p136
      %p139 = scmp.ne.s32.totalorder %s122, %s138
      %p140 = scmp.eq.s32.totalorder %s25, 0
      %p141 = por %p139, %p140
      %p142 = scmp.le.s32.totalorder 1, %s19
      %p143 = scmp.lt.s32.totalorder %s19, 3
      %p144 = pnand %p142, %p143
      %p145 = pneg %p144
      // Predicated region
      $region9: #{tpu_custom_call.1} parent=5 // pred_check
        _
      $region10: #{tpu_custom_call.1} parent=5 // pred_check_branch
        %147 = sbr.rel (%p144) target = $region12
      $region11: #{tpu_custom_call.1} parent=5 // pred_region
        %s148 = ssub.s32 %s19, 1
        // Predicated region
        $region13: #{tpu_custom_call.1} parent=11 // pred_check
          %p149 = pneg %p40
        $region14: #{tpu_custom_call.1} parent=11 // pred_check_branch
          %151 = sbr.rel (%p149) target = $region16
        $region15: #{tpu_custom_call.1} parent=11 // pred_region
          %s153 = ssub.s32 16, 16
          %154 = vsyncadd [#allocation5], %s153
          %157 = dma.hbm_to_smem %s0, 16, [#allocation2], [#allocation5]
        $region16: #{tpu_custom_call.1} parent=11 // pred_fallthru
          _
        // Predicated region
        $region17: #{tpu_custom_call.1} parent=11 // pred_check
          %p158 = pneg %p61
        $region18: #{tpu_custom_call.1} parent=11 // pred_check_branch
          %160 = sbr.rel (%p158) target = $region20
        $region19: #{tpu_custom_call.1} parent=11 // pred_region
          %s162 = ssub.s32 16, 16
          %163 = vsyncadd [#allocation6], %s162
          %s165 = sshll.u32 %s1, 4
          %s166 = int_to_ptr.vmem [resolvable:$true] %s165
          %168 = dma.vmem_to_smem %s166, 16, [#allocation7], [#allocation6]
        $region20: #{tpu_custom_call.1} parent=11 // pred_fallthru
          _
        // Predicated region
        $region21: #{tpu_custom_call.1} parent=11 // pred_check
          %p169 = pneg %p82
        $region22: #{tpu_custom_call.1} parent=11 // pred_check_branch
          %171 = sbr.rel (%p169) target = $region24
        $region23: #{tpu_custom_call.1} parent=11 // pred_region
          %s173 = ssub.s32 16, 16
          %174 = vsyncadd [#allocation9], %s173
          %s176 = sshll.u32 %s2, 4
          %s177 = int_to_ptr.vmem [resolvable:$true] %s176
          %179 = dma.vmem_to_smem %s177, 16, [#allocation8], [#allocation9]
        $region24: #{tpu_custom_call.1} parent=11 // pred_fallthru
          _
      $region12: #{tpu_custom_call.1} parent=5 // pred_fallthru
        _
      %p180 = scmp.lt.s32.totalorder %s19, 2
      // Predicated region
      $region25: #{tpu_custom_call.1} parent=5 // pred_check
        %p181 = pneg %p180
      $region26: #{tpu_custom_call.1} parent=5 // pred_check_branch
        %183 = sbr.rel (%p181) target = $region28
      $region27: #{tpu_custom_call.1} parent=5 // pred_region
        // Predicated region
        $region29: #{tpu_custom_call.1} parent=27 // pred_check
          %p184 = pneg %p102
        $region30: #{tpu_custom_call.1} parent=27 // pred_check_branch
          %186 = sbr.rel (%p184) target = $region32
        $region31: #{tpu_custom_call.1} parent=27 // pred_region
          %s187 = sand.u32 %s92, 1
          %s188 = scalar_lea.sflag [#allocation3], %s187
          %s189 = sand.u32 %s92, 1
          %s190 = smul.addr %s189, 8
          %s191 = scalar_lea.vmem [#allocation10], %s190
          %s193 = ssub.s32 128, 128
          %194 = vsyncadd %s188, %s193
          %s195 = smul.addr %s19, 128
          %s196 = scalar_lea.hbm %s3, %s195
          %s198 = sshll.u32 %s191, 4
          %s199 = int_to_ptr.vmem [resolvable:$true] %s198
          %201 = dma.hbm_to_vmem [thread:$0]  %s196, 128, %s199, %s188
        $region32: #{tpu_custom_call.1} parent=27 // pred_fallthru
          _
      $region28: #{tpu_custom_call.1} parent=5 // pred_fallthru
        _
      %p202 = scmp.le.s32.totalorder 1, %s19
      %p203 = scmp.lt.s32.totalorder %s19, 3
      %p204 = pnand %p202, %p203
      %p205 = pneg %p204
      // Predicated region
      $region33: #{tpu_custom_call.1} parent=5 // pred_check
        _
      $region34: #{tpu_custom_call.1} parent=5 // pred_check_branch
        %207 = sbr.rel (%p204) target = $region36
      $region35: #{tpu_custom_call.1} parent=5 // pred_region
        %s208 = ssub.s32 %s19, 1
        // Predicated region
        $region37: #{tpu_custom_call.1} parent=35 // pred_check
          %p209 = pneg %p40
        $region38: #{tpu_custom_call.1} parent=35 // pred_check_branch
          %211 = sbr.rel (%p209) target = $region40
        $region39: #{tpu_custom_call.1} parent=35 // pred_region
          %212 = dma.done [#allocation5], 16
        $region40: #{tpu_custom_call.1} parent=35 // pred_fallthru
          _
        // Predicated region
        $region41: #{tpu_custom_call.1} parent=35 // pred_check
          %p213 = pneg %p61
        $region42: #{tpu_custom_call.1} parent=35 // pred_check_branch
          %215 = sbr.rel (%p213) target = $region44
        $region43: #{tpu_custom_call.1} parent=35 // pred_region
          %216 = dma.done [#allocation6], 16
        $region44: #{tpu_custom_call.1} parent=35 // pred_fallthru
          _
        // Predicated region
        $region45: #{tpu_custom_call.1} parent=35 // pred_check
          %p217 = pneg %p82
        $region46: #{tpu_custom_call.1} parent=35 // pred_check_branch
          %219 = sbr.rel (%p217) target = $region48
        $region47: #{tpu_custom_call.1} parent=35 // pred_region
          %220 = dma.done [#allocation9], 16
        $region48: #{tpu_custom_call.1} parent=35 // pred_fallthru
          _
        %s221 = sand.u32 %s95, 1
        %s222 = scalar_lea.sflag [#allocation3], %s221
        %s223 = sand.u32 %s95, 1
        %s224 = smul.addr %s223, 8
        %s225 = scalar_lea.vmem [#allocation10], %s224
        // Predicated region
        $region49: #{tpu_custom_call.1} parent=35 // pred_check
          %p226 = pneg %p108
        $region50: #{tpu_custom_call.1} parent=35 // pred_check_branch
          %228 = sbr.rel (%p226) target = $region52
        $region51: #{tpu_custom_call.1} parent=35 // pred_region
          %229 = dma.done %s222, 128
        $region52: #{tpu_custom_call.1} parent=35 // pred_fallthru
          _
        %230 = sfence
        %p231 = pneg %p40
        %p232 = pneg %p37
        %p233 = pneg %p61
        %p234 = pneg %p58
        %p235 = pneg %p82
        %p236 = pneg %p79
        %s237 = sand.u32 %s95, 1
        %s238 = scalar_lea.sflag [#allocation3], %s237
        %s239 = sand.u32 %s95, 1
        %s240 = smul.addr %s239, 8
        %s241 = scalar_lea.vmem [#allocation10], %s240
        %p242 = pneg %p108
        %p243 = pneg %p105
        %p244 = pneg %p134
        %p245 = pneg %p131
        %s246 = sand.u32 %s121, 1
        %s247 = scalar_lea.sflag [#allocation4], %s246
        %s248 = sand.u32 %s121, 1
        %s249 = smul.addr %s248, 8
        %s250 = scalar_lea.vmem [#allocation11], %s249
        %v251 = vld [vmem:[%s225] sm:$0xff]
        %s252 = sld [smem:[#allocation2 + $0x1]]
        %s253 = sld [smem:[#allocation2 + $0x2]]
        %s254 = sld [smem:[#allocation2 + $0x3]]
        %s255 = sld [smem:[#allocation2 + $0x4]]
        %s256 = sld [smem:[#allocation2 + $0x5]]
        %s257 = sld [smem:[#allocation2 + $0x6]]
        %s258 = sld [smem:[#allocation2 + $0x7]]
        %s259 = sld [smem:[#allocation2 + $0x8]]
        %s260 = sld [smem:[#allocation7]]
        %s261 = sld [smem:[#allocation7 + $0x1]]
        %s262 = sld [smem:[#allocation7 + $0x2]]
        %s263 = sld [smem:[#allocation7 + $0x3]]
        %s264 = sld [smem:[#allocation7 + $0x4]]
        %s265 = sld [smem:[#allocation7 + $0x5]]
        %s266 = sld [smem:[#allocation7 + $0x6]]
        %s267 = sld [smem:[#allocation7 + $0x7]]
        %s268 = sld [smem:[#allocation7 + $0x8]]
        %s269 = sld [smem:[#allocation8]]
        %s270 = sld [smem:[#allocation8 + $0x1]]
        %s271 = sld [smem:[#allocation8 + $0x2]]
        %s272 = sld [smem:[#allocation8 + $0x3]]
        %s273 = sld [smem:[#allocation8 + $0x4]]
        %s274 = sld [smem:[#allocation8 + $0x5]]
        %s275 = sld [smem:[#allocation8 + $0x6]]
        %s276 = sld [smem:[#allocation8 + $0x7]]
        %s277 = sld [smem:[#allocation8 + $0x8]]
        %v278 = vstv %s260
        %v279 = vstv %s269
        %v280 = vstv %s252
        %vm281 = vcmp.lt.f32.partialorder %v280, %v251
        %v282 = vstv %s261
        %v283 = vsel %vm281, %v282, %v278
        %v284 = vstv %s270
        %v285 = vsel %vm281, %v284, %v279
        %v286 = vstv %s253
        %vm287 = vcmp.lt.f32.partialorder %v286, %v251
        %v288 = vstv %s262
        %v289 = vsel %vm287, %v288, %v283
        %v290 = vstv %s271
        %v291 = vsel %vm287, %v290, %v285
        %v292 = vstv %s254
        %vm293 = vcmp.lt.f32.partialorder %v292, %v251
        %v294 = vstv %s263
        %v295 = vsel %vm293, %v294, %v289
        %v296 = vstv %s272
        %v297 = vsel %vm293, %v296, %v291
        %v298 = vstv %s255
        %vm299 = vcmp.lt.f32.partialorder %v298, %v251
        %v300 = vstv %s264
        %v301 = vsel %vm299, %v300, %v295
        %v302 = vstv %s273
        %v303 = vsel %vm299, %v302, %v297
        %v304 = vstv %s256
        %vm305 = vcmp.lt.f32.partialorder %v304, %v251
        %v306 = vstv %s265
        %v307 = vsel %vm305, %v306, %v301
        %v308 = vstv %s274
        %v309 = vsel %vm305, %v308, %v303
        %v310 = vstv %s257
        %vm311 = vcmp.lt.f32.partialorder %v310, %v251
        %v312 = vstv %s266
        %v313 = vsel %vm311, %v312, %v307
        %v314 = vstv %s275
        %v315 = vsel %vm311, %v314, %v309
        %v316 = vstv %s258
        %vm317 = vcmp.lt.f32.partialorder %v316, %v251
        %v318 = vstv %s267
        %v319 = vsel %vm317, %v318, %v313
        %v320 = vstv %s276
        %v321 = vsel %vm317, %v320, %v315
        %v322 = vstv %s259
        %vm323 = vcmp.lt.f32.partialorder %v322, %v251
        %v324 = vstv %s268
        %v325 = vsel %vm323, %v324, %v319
        %v326 = vstv %s277
        %v327 = vsel %vm323, %v326, %v321
        %v328 = vmul.f32 %v325, %v251
        %v329 = vadd.f32 %v328, %v327
        %330 = vst [vmem:[%s250] sm:$0xff] %v329
        %s331 = sand.u32 %s121, 1
        %s332 = scalar_lea.sflag [#allocation4], %s331
        %s333 = sand.u32 %s121, 1
        %s334 = smul.addr %s333, 8
        %s335 = scalar_lea.vmem [#allocation11], %s334
        // Predicated region
        $region53: #{tpu_custom_call.1} parent=35 // pred_check
          %p336 = pneg %p131
        $region54: #{tpu_custom_call.1} parent=35 // pred_check_branch
          %338 = sbr.rel (%p336) target = $region56
        $region55: #{tpu_custom_call.1} parent=35 // pred_region
          %s340 = ssub.s32 128, 128
          %341 = vsyncadd %s332, %s340
          %s342 = smul.addr %s24, 128
          %s343 = scalar_lea.hbm %s4, %s342
          %s345 = sshll.u32 %s335, 4
          %s346 = int_to_ptr.vmem [resolvable:$true] %s345
          %348 = dma.vmem_to_hbm [thread:$0]  %s346, 128, %s343, %s332
        $region56: #{tpu_custom_call.1} parent=35 // pred_fallthru
          _
      $region36: #{tpu_custom_call.1} parent=5 // pred_fallthru
        _
      %p349 = scmp.le.s32.totalorder 2, %s19
      // Predicated region
      $region57: #{tpu_custom_call.1} parent=5 // pred_check
        %p350 = pneg %p349
      $region58: #{tpu_custom_call.1} parent=5 // pred_check_branch
        %352 = sbr.rel (%p350) target = $region60
      $region59: #{tpu_custom_call.1} parent=5 // pred_region
        %s353 = ssub.s32 %s19, 2
        // Predicated region
        $region61: #{tpu_custom_call.1} parent=59 // pred_check
          %p354 = pneg %p137
        $region62: #{tpu_custom_call.1} parent=59 // pred_check_branch
          %356 = sbr.rel (%p354) target = $region64
        $region63: #{tpu_custom_call.1} parent=59 // pred_region
          %s357 = sand.u32 %s122, 1
          %s358 = scalar_lea.sflag [#allocation4], %s357
          %s359 = sand.u32 %s122, 1
          %s360 = smul.addr %s359, 8
          %s361 = scalar_lea.vmem [#allocation11], %s360
          %362 = dma.done %s358, 128
        $region64: #{tpu_custom_call.1} parent=59 // pred_fallthru
          _
      $region60: #{tpu_custom_call.1} parent=5 // pred_fallthru
        _
    $region6: #{tpu_custom_call.1} parent=1 // loop_footer
      %s23 = sadd.s32 1, %s19
    $region7: #{tpu_custom_call.1} parent=1 // loop_footer_branch
      %18 = sbr.rel target = $region3
    $region8: #{tpu_custom_call.1} parent=1 // loop_exit
      _
    %363 = vsyncpa [#allocation3], 1
    %s364 = scalar_lea.sflag [#allocation3], 1
    %365 = vsyncpa %s364, 1
    %366 = vsyncpa [#allocation4], 1
    %s367 = scalar_lea.sflag [#allocation4], 1
    %368 = vsyncpa %s367, 1
    %369 = vsyncpa [#allocation5], 1
    %s370 = scalar_lea.sflag [#allocation5], 1
    %371 = vsyncpa %s370, 1
    %372 = vsyncpa [#allocation6], 1
    %s373 = scalar_lea.sflag [#allocation6], 1
    %374 = vsyncpa %s373, 1
    %375 = vsyncpa [#allocation9], 1

</llo_original>
